<compile_context>
chip_gen: v5e
topology: v5e:2x2
jax: 0.10.0
libtpu: 0.0.40
codegen_flags: <defaults>
</compile_context>

<pallas_src>
import math

import jax
import jax.numpy as jnp
from jax.experimental import pallas as pl
from jax.experimental.pallas import tpu as pltpu

MEXICAN_HAT_C = 2.0 / (math.sqrt(3.0) * math.pi ** 0.25)
BN_EPS = 1e-5


def _round_up(v, m):
    return ((v + m - 1) // m) * m


def wavkan_kernel(x_ref, inv_s_ref, trans_ref, ww_ref, gamma_ref, beta_ref,
                  o_ref, acc_ref):
    # Grid: (j over OUT tiles ["parallel"], k over IN tiles ["arbitrary", last]).
    k = pl.program_id(1)

    @pl.when(k == 0)
    def _():
        acc_ref[...] = jnp.zeros_like(acc_ref)

    # (B, block_in) activation chunk; each (b, i) scalar is splatted across the OUT lanes.
    x = x_ref[...].astype(jnp.float32)[:, :, None]            # (B, block_in, 1)
    inv_s = inv_s_ref[...].astype(jnp.float32)[None, :, :]    # (1, block_in, block_out)
    t = trans_ref[...].astype(jnp.float32)[None, :, :]
    w = ww_ref[...].astype(jnp.float32)[None, :, :]           # MEXICAN_HAT_C folded in

    xs = (x - t) * inv_s                                      # (B, block_in, block_out)
    xs2 = xs * xs
    wav = (xs2 - 1.0) * jnp.exp(-0.5 * xs2) * w
    acc_ref[...] += jnp.sum(wav, axis=1)                      # reduce this IN chunk

    @pl.when(k == pl.num_programs(1) - 1)
    def _():
        # BatchNorm1d, training mode: per-feature batch mean / biased variance.
        # Correct because the batch axis is never tiled.
        wout = acc_ref[...]                                   # (B, block_out) f32
        mean = jnp.mean(wout, axis=0, keepdims=True)
        centered = wout - mean
        var = jnp.mean(centered * centered, axis=0, keepdims=True)
        y = centered * jax.lax.rsqrt(var + BN_EPS)
        o_ref[...] = (y * gamma_ref[...].astype(jnp.float32)
                      + beta_ref[...].astype(jnp.float32)).astype(o_ref.dtype)


def wavkan_linear(x, scale, translation, wavelet_weights, gamma, beta,
                  *, block_out=None, block_in=None, weights_dtype=None):
    B, IN = x.shape
    OUT = scale.shape[0]

    # ---- tile selection: lane-dense OUT tiles; tile IN only when it is large ----------
    if block_in is None:
        block_in = IN if IN <= 512 else 512
    if IN <= block_in:
        block_in, IN_p = IN, IN                # single IN tile: full-dim block
    else:
        block_in = _round_up(block_in, 128)    # lane-aligned x chunks
        IN_p = _round_up(IN, block_in)

    if block_out is None:
        block_out = OUT if OUT <= 1024 else 512
    if OUT <= block_out:
        OUT_p = _round_up(OUT, 128)            # lane-dense output tile
        block_out = OUT_p
    else:
        block_out = _round_up(block_out, 128)
        OUT_p = _round_up(OUT, block_out)

    n_out = OUT_p // block_out
    n_in = IN_p // block_in

    # ---- precompute / re-layout parameters (folding divide + wavelet constant) --------
    wdt = weights_dtype if weights_dtype is not None else scale.dtype
    inv_scale_t = (1.0 / scale).T.astype(wdt)                  # (IN, OUT)
    trans_t = translation.T.astype(wdt)                        # (IN, OUT)
    ww_t = (MEXICAN_HAT_C * wavelet_weights).T.astype(wdt)     # (IN, OUT), constant folded
    gamma2 = jnp.asarray(gamma, jnp.float32).reshape(1, OUT)
    beta2 = jnp.asarray(beta, jnp.float32).reshape(1, OUT)

    def _pad(a, rows, cols):
        pr, pc = rows - a.shape[0], cols - a.shape[1]
        return a if (pr == 0 and pc == 0) else jnp.pad(a, ((0, pr), (0, pc)))

    # Zero padding is safe: padded wavelet_weights are 0, so padded rows/cols contribute
    # nothing, and padded inv_scale=0 avoids any inf/nan.
    x_p = _pad(x, B, IN_p)
    inv_scale_t = _pad(inv_scale_t, IN_p, OUT_p)
    trans_t = _pad(trans_t, IN_p, OUT_p)
    ww_t = _pad(ww_t, IN_p, OUT_p)
    gamma2 = _pad(gamma2, 1, OUT_p)
    beta2 = _pad(beta2, 1, OUT_p)

    # ---- VMEM budget (explicit limit, capped for v7x's 64 MiB per-TC VMEM) ------------
    w_bytes = jnp.dtype(wdt).itemsize
    x_bytes = jnp.dtype(x.dtype).itemsize
    vmem_est = (
        2 * B * block_in * x_bytes                  # x chunk (double-buffered)
        + 3 * 2 * block_in * block_out * w_bytes    # 3 weight operands (double-buffered)
        + 2 * 2 * block_out * 4                     # gamma / beta
        + 2 * B * block_out * x_bytes               # output tile
        + B * block_out * 4                         # f32 accumulator scratch
        + 6 * B * block_in * block_out * 4          # headroom for 3-D temporaries
    )
    vmem_limit = int(min(max(2 * vmem_est, 16 << 20), 64 << 20))

    out_p = pl.pallas_call(
        wavkan_kernel,
        out_shape=jax.ShapeDtypeStruct((B, OUT_p), x.dtype),
        grid_spec=pltpu.PrefetchScalarGridSpec(
            num_scalar_prefetch=0,
            grid=(n_out, n_in),
            in_specs=[
                pl.BlockSpec((B, block_in), lambda j, k: (0, k)),           # x
                pl.BlockSpec((block_in, block_out), lambda j, k: (k, j)),   # 1/scale^T
                pl.BlockSpec((block_in, block_out), lambda j, k: (k, j)),   # translation^T
                pl.BlockSpec((block_in, block_out), lambda j, k: (k, j)),   # C*ww^T
                pl.BlockSpec((1, block_out), lambda j, k: (0, j)),          # bn gamma
                pl.BlockSpec((1, block_out), lambda j, k: (0, j)),          # bn beta
            ],
            out_specs=pl.BlockSpec((B, block_out), lambda j, k: (0, j)),
            scratch_shapes=[pltpu.VMEM((B, block_out), jnp.float32)],
        ),
        compiler_params=pltpu.CompilerParams(
            dimension_semantics=("parallel", "arbitrary"),
            vmem_limit_bytes=vmem_limit,
        ),
    )(x_p, inv_scale_t, trans_t, ww_t, gamma2, beta2)

    return out_p[:, :OUT] if OUT_p != OUT else out_p


def reference(x, scale, translation, wavelet_weights, gamma, beta):
    xs = (x[:, None, :] - translation[None]) / scale[None]
    wav = MEXICAN_HAT_C * (xs * xs - 1.0) * jnp.exp(-0.5 * xs * xs)
    wout = jnp.sum(wav * wavelet_weights[None], axis=2)
    mean = jnp.mean(wout, axis=0, keepdims=True)
    var = jnp.mean((wout - mean) ** 2, axis=0, keepdims=True)
    return (wout - mean) / jnp.sqrt(var + BN_EPS) * gamma + beta


def init_params(key, in_features, out_features):
    # Matches the module's __init__: kaiming_uniform_(a=sqrt(5)) -> bound = 1/sqrt(fan_in).
    k_ww, k_w1 = jax.random.split(key)
    bound = 1.0 / math.sqrt(in_features)
    scale = jnp.ones((out_features, in_features), jnp.float32)
    translation = jnp.zeros((out_features, in_features), jnp.float32)
    wavelet_weights = jax.random.uniform(
        k_ww, (out_features, in_features), jnp.float32, -bound, bound)
    weight1 = jax.random.uniform(                       # unused: dead code in forward
        k_w1, (out_features, in_features), jnp.float32, -bound, bound)
    gamma = jnp.ones((1, out_features), jnp.float32)    # BatchNorm1d weight
    beta = jnp.zeros((1, out_features), jnp.float32)    # BatchNorm1d bias
    return scale, translation, wavelet_weights, weight1, gamma, beta


if __name__ == "__main__":
    B, IN, OUT = 8, 32, 256
    key = jax.random.PRNGKey(0)
    kx, kp = jax.random.split(key)

    x = jax.random.normal(kx, (B, IN), jnp.float32)
    scale, translation, wavelet_weights, weight1, gamma, beta = init_params(kp, IN, OUT)

    # TODO(synk): base_output = F.linear(x, weight1) is computed-then-discarded in the
    # PyTorch forward, so it is not implemented in the kernel.
    out = wavkan_linear(x, scale, translation, wavelet_weights, gamma, beta)
    out = jax.block_until_ready(out)

    ref = reference(x, scale, translation, wavelet_weights, gamma, beta)
    assert out.shape == (B, OUT)
    assert jnp.allclose(out, ref, atol=1e-4, rtol=1e-4), "mismatch vs pure-JAX reference"

    print("KERNEL_OK")
</pallas_src>

<mosaic_0001>
module attributes {stable_mosaic.version = 11 : i64} {
  func.func @wavkan_kernel(%arg0: i32, %arg1: i32, %arg2: memref<8x32xf32, #tpu.memory_space<vmem>>, %arg3: memref<32x256xf32, #tpu.memory_space<vmem>>, %arg4: memref<32x256xf32, #tpu.memory_space<vmem>>, %arg5: memref<32x256xf32, #tpu.memory_space<vmem>>, %arg6: memref<1x256xf32, #tpu.memory_space<vmem>>, %arg7: memref<1x256xf32, #tpu.memory_space<vmem>>, %arg8: memref<8x256xf32, #tpu.memory_space<vmem>>, %arg9: memref<8x256xf32, #tpu.memory_space<vmem>>) attributes {dimension_semantics = [#tpu.dimension_semantics<parallel>, #tpu.dimension_semantics<arbitrary>], iteration_bounds = array<i64: 1, 1>, scalar_prefetch = 0 : i64, scratch_operands = 1 : i64, tpu.core_type = #tpu.core_type<tc>, window_params = [{transform_indices = @transform_0, window_bounds = array<i64: 8, 32>}, {transform_indices = @transform_1, window_bounds = array<i64: 32, 256>}, {transform_indices = @transform_2, window_bounds = array<i64: 32, 256>}, {transform_indices = @transform_3, window_bounds = array<i64: 32, 256>}, {transform_indices = @transform_4, window_bounds = array<i64: 1, 256>}, {transform_indices = @transform_5, window_bounds = array<i64: 1, 256>}, {transform_indices = @transform_6, window_bounds = array<i64: 8, 256>}]} {
    %c0_i32 = arith.constant 0 : i32
    %0 = arith.cmpi eq, %arg1, %c0_i32 : i32
    %1 = arith.extui %0 : i1 to i32
    %c0_i32_0 = arith.constant 0 : i32
    %2 = arith.cmpi ne, %1, %c0_i32_0 : i32
    scf.if %2 {
      %cst_16 = arith.constant 0.000000e+00 : f32
      %32 = vector.broadcast %cst_16 : f32 to vector<8x256xf32>
      %c0_17 = arith.constant 0 : index
      %c0_18 = arith.constant 0 : index
      %33 = vector.load %arg9[%c0_17, %c0_18] : memref<8x256xf32, #tpu.memory_space<vmem>>, vector<8x256xf32>
      tpu.vector_store %arg9[%c0_17, %c0_18], %32 {strides = array<i32>} : memref<8x256xf32, #tpu.memory_space<vmem>>, vector<8x256xf32>,
    } else {
    }
    %c0 = arith.constant 0 : index
    %c0_1 = arith.constant 0 : index
    %3 = vector.load %arg2[%c0, %c0_1] : memref<8x32xf32, #tpu.memory_space<vmem>>, vector<8x32xf32>
    %4 = vector.shape_cast %3 : vector<8x32xf32> to vector<8x32x1xf32>
    %c0_2 = arith.constant 0 : index
    %c0_3 = arith.constant 0 : index
    %5 = vector.load %arg3[%c0_2, %c0_3] : memref<32x256xf32, #tpu.memory_space<vmem>>, vector<32x256xf32>
    %6 = vector.shape_cast %5 : vector<32x256xf32> to vector<1x32x256xf32>
    %c0_4 = arith.constant 0 : index
    %c0_5 = arith.constant 0 : index
    %7 = vector.load %arg4[%c0_4, %c0_5] : memref<32x256xf32, #tpu.memory_space<vmem>>, vector<32x256xf32>
    %8 = vector.shape_cast %7 : vector<32x256xf32> to vector<1x32x256xf32>
    %c0_6 = arith.constant 0 : index
    %c0_7 = arith.constant 0 : index
    %9 = vector.load %arg5[%c0_6, %c0_7] : memref<32x256xf32, #tpu.memory_space<vmem>>, vector<32x256xf32>
    %10 = vector.shape_cast %9 : vector<32x256xf32> to vector<1x32x256xf32>
    %11 = vector.broadcast %4 : vector<8x32x1xf32> to vector<8x32x256xf32>
    %12 = vector.broadcast %8 : vector<1x32x256xf32> to vector<8x32x256xf32>
    %13 = arith.subf %11, %12 : vector<8x32x256xf32>
    %14 = vector.broadcast %6 : vector<1x32x256xf32> to vector<8x32x256xf32>
    %15 = arith.mulf %13, %14 : vector<8x32x256xf32>
    %16 = arith.mulf %15, %15 : vector<8x32x256xf32>
    %cst = arith.constant 1.000000e+00 : f32
    %17 = vector.broadcast %cst : f32 to vector<8x32x256xf32>
    %18 = arith.subf %16, %17 : vector<8x32x256xf32>
    %cst_8 = arith.constant -5.000000e-01 : f32
    %19 = vector.broadcast %cst_8 : f32 to vector<8x32x256xf32>
    %20 = arith.mulf %19, %16 : vector<8x32x256xf32>
    %21 = math.exp %20 : vector<8x32x256xf32>
    %22 = arith.mulf %18, %21 : vector<8x32x256xf32>
    %23 = vector.broadcast %10 : vector<1x32x256xf32> to vector<8x32x256xf32>
    %24 = arith.mulf %22, %23 : vector<8x32x256xf32>
    %c0_9 = arith.constant 0 : index
    %c0_10 = arith.constant 0 : index
    %25 = vector.load %arg9[%c0_9, %c0_10] : memref<8x256xf32, #tpu.memory_space<vmem>>, vector<8x256xf32>
    %cst_11 = arith.constant dense<0.000000e+00> : vector<8x256xf32>
    %26 = vector.multi_reduction <add>, %24, %cst_11 [1] : vector<8x32x256xf32> to vector<8x256xf32>
    %27 = arith.addf %25, %26 : vector<8x256xf32>
    %c0_12 = arith.constant 0 : index
    %c0_13 = arith.constant 0 : index
    %28 = vector.load %arg9[%c0_12, %c0_13] : memref<8x256xf32, #tpu.memory_space<vmem>>, vector<8x256xf32>
    tpu.vector_store %arg9[%c0_12, %c0_13], %27 {strides = array<i32>} : memref<8x256xf32, #tpu.memory_space<vmem>>, vector<8x256xf32>,
    %c0_i32_14 = arith.constant 0 : i32
    %29 = arith.cmpi eq, %arg1, %c0_i32_14 : i32
    %30 = arith.extui %29 : i1 to i32
    %c0_i32_15 = arith.constant 0 : i32
    %31 = arith.cmpi ne, %30, %c0_i32_15 : i32
    scf.if %31 {
      %c0_16 = arith.constant 0 : index
      %c0_17 = arith.constant 0 : index
      %32 = vector.load %arg9[%c0_16, %c0_17] : memref<8x256xf32, #tpu.memory_space<vmem>>, vector<8x256xf32>
      %cst_18 = arith.constant dense<0.000000e+00> : vector<256xf32>
      %33 = vector.multi_reduction <add>, %32, %cst_18 [0] : vector<8x256xf32> to vector<256xf32>
      %34 = vector.shape_cast %33 : vector<256xf32> to vector<1x256xf32>
      %cst_19 = arith.constant 8.000000e+00 : f32
      %35 = vector.broadcast %cst_19 : f32 to vector<1x256xf32>
      %36 = arith.divf %34, %35 : vector<1x256xf32>
      %37 = vector.broadcast %36 : vector<1x256xf32> to vector<8x256xf32>
      %38 = arith.subf %32, %37 : vector<8x256xf32>
      %39 = arith.mulf %38, %38 : vector<8x256xf32>
      %cst_20 = arith.constant dense<0.000000e+00> : vector<256xf32>
      %40 = vector.multi_reduction <add>, %39, %cst_20 [0] : vector<8x256xf32> to vector<256xf32>
      %41 = vector.shape_cast %40 : vector<256xf32> to vector<1x256xf32>
      %cst_21 = arith.constant 8.000000e+00 : f32
      %42 = vector.broadcast %cst_21 : f32 to vector<1x256xf32>
      %43 = arith.divf %41, %42 : vector<1x256xf32>
      %cst_22 = arith.constant 9.99999974E-6 : f32
      %44 = vector.broadcast %cst_22 : f32 to vector<1x256xf32>
      %45 = arith.addf %43, %44 : vector<1x256xf32>
      %46 = math.rsqrt %45 : vector<1x256xf32>
      %47 = vector.broadcast %46 : vector<1x256xf32> to vector<8x256xf32>
      %48 = arith.mulf %38, %47 : vector<8x256xf32>
      %c0_23 = arith.constant 0 : index
      %c0_24 = arith.constant 0 : index
      %49 = vector.load %arg6[%c0_23, %c0_24] : memref<1x256xf32, #tpu.memory_space<vmem>>, vector<1x256xf32>
      %50 = vector.broadcast %49 : vector<1x256xf32> to vector<8x256xf32>
      %51 = arith.mulf %48, %50 : vector<8x256xf32>
      %c0_25 = arith.constant 0 : index
      %c0_26 = arith.constant 0 : index
      %52 = vector.load %arg7[%c0_25, %c0_26] : memref<1x256xf32, #tpu.memory_space<vmem>>, vector<1x256xf32>
      %53 = vector.broadcast %52 : vector<1x256xf32> to vector<8x256xf32>
      %54 = arith.addf %51, %53 : vector<8x256xf32>
      %c0_27 = arith.constant 0 : index
      %c0_28 = arith.constant 0 : index
      %55 = vector.load %arg8[%c0_27, %c0_28] : memref<8x256xf32, #tpu.memory_space<vmem>>, vector<8x256xf32>
      tpu.vector_store %arg8[%c0_27, %c0_28], %54 {strides = array<i32>} : memref<8x256xf32, #tpu.memory_space<vmem>>, vector<8x256xf32>,
    } else {
    }
    return
  }
  func.func @transform_0(%arg0: i32, %arg1: i32) -> (i32, i32) {
    %c0_i32 = arith.constant 0 : i32
    %c0_i32_0 = arith.constant 0 : i32
    return %c0_i32, %arg1 : i32, i32
  }
  func.func @transform_1(%arg0: i32, %arg1: i32) -> (i32, i32) {
    %c0_i32 = arith.constant 0 : i32
    return %arg1, %arg0 : i32, i32
  }
  func.func @transform_2(%arg0: i32, %arg1: i32) -> (i32, i32) {
    %c0_i32 = arith.constant 0 : i32
    return %arg1, %arg0 : i32, i32
  }
  func.func @transform_3(%arg0: i32, %arg1: i32) -> (i32, i32) {
    %c0_i32 = arith.constant 0 : i32
    return %arg1, %arg0 : i32, i32
  }
  func.func @transform_4(%arg0: i32, %arg1: i32) -> (i32, i32) {
    %c0_i32 = arith.constant 0 : i32
    %c0_i32_0 = arith.constant 0 : i32
    return %c0_i32, %arg0 : i32, i32
  }
  func.func @transform_5(%arg0: i32, %arg1: i32) -> (i32, i32) {
    %c0_i32 = arith.constant 0 : i32
    %c0_i32_0 = arith.constant 0 : i32
    return %c0_i32, %arg0 : i32, i32
  }
  func.func @transform_6(%arg0: i32, %arg1: i32) -> (i32, i32) {
    %c0_i32 = arith.constant 0 : i32
    %c0_i32_0 = arith.constant 0 : i32
    return %c0_i32, %arg0 : i32, i32
  }
}

</mosaic_0001>

<llo_original>
// kernel: tpu_custom_call.1
$region0: #{tpu_custom_call.1}
  #allocation0 [shape = 'u32[]', space=smem, size = 0x4, offset = 0x4, fixed_abs, tag = 'smem constant byte address 0x4 - core index']
  #allocation1 [shape = 'u32[72,128]{1,0:T(1,128)}', space=vmem, size = 0x9000, scoped, tag = 'internal scratch']
  #allocation2 [shape = 'f32[8,256]{1,0:T(8,128)}', space=vmem, size = 0x2000, scoped, tag = 'scratch operand']
  %s0 = inlined_call_operand.hbm [shape: f32[8,32], index: 0, kind: input, shape index: {}]
  %s1 = inlined_call_operand.hbm [shape: f32[32,256], index: 1, kind: input, shape index: {}]
  %s2 = inlined_call_operand.hbm [shape: f32[32,256], index: 2, kind: input, shape index: {}]
  %s3 = inlined_call_operand.hbm [shape: f32[32,256], index: 3, kind: input, shape index: {}]
  %s4 = inlined_call_operand.vmem [shape: f32[1,256], index: 4, kind: input, shape index: {}]
  %s5 = inlined_call_operand.vmem [shape: f32[1,256], index: 5, kind: input, shape index: {}]
  %s6 = inlined_call_operand.hbm [shape: f32[8,256], index: 6, kind: output, shape index: {}]
  %s7 = sld [smem:[#allocation0]]
  $region58: #{tpu_custom_call.1} parent=0
    _
  %s9 = ssub.s32 1, %s7
  %s10 = scalar_select 0, %s9, %s7
  $region1: #{tpu_custom_call.1} parent=0
    #allocation3 [shape = 'u8[4096]{0}', space=vmem, size = 0x1000, scoped, tag = 'input window, operand 0, single buffered']
    #allocation4 [shape = 's32[1]{0}', space=sflag, size = 0x4, scoped, tag = 'scoped memory for tpu_custom_call.1']
    #allocation5 [shape = 's32[1]{0}', space=sflag, size = 0x4, scoped, tag = 'scoped memory for tpu_custom_call.1']
    #allocation6 [shape = 'u8[32768]{0}', space=vmem, size = 0x8000, scoped, tag = 'input window, operand 1, single buffered']
    #allocation7 [shape = 's32[1]{0}', space=sflag, size = 0x4, scoped, tag = 'scoped memory for tpu_custom_call.1']
    #allocation8 [shape = 'u8[32768]{0}', space=vmem, size = 0x8000, scoped, tag = 'input window, operand 2, single buffered']
    #allocation9 [shape = 'u8[32768]{0}', space=vmem, size = 0x8000, scoped, tag = 'input window, operand 3, single buffered']
    #allocation10 [shape = 's32[1]{0}', space=sflag, size = 0x4, scoped, tag = 'scoped memory for tpu_custom_call.1']
    #allocation11 [shape = 'u8[8192]{0}', space=vmem, size = 0x2000, scoped, tag = 'output window, operand 0, single buffered']
    %11 = vsyncpa [#allocation4], 0
    %12 = vsyncpa [#allocation7], 0
    %13 = vsyncpa [#allocation10], 0
    %14 = vsyncpa [#allocation5], 0
    // Predicated region
    $region2: #{tpu_custom_call.1} parent=1 // pred_check
      _
    $region3: #{tpu_custom_call.1} parent=1 // pred_check_branch
      %16 = sbr.rel (0) target = $region5
    $region4: #{tpu_custom_call.1} parent=1 // pred_region
      %18 = vsyncadd [#allocation4], 0
      %s20 = sshll.u32 %s0, 4
      %s21 = int_to_ptr.hbm [resolvable:$true] %s20
      %s22 = sshll.u32 [#allocation3], 4
      %s23 = int_to_ptr.vmem [resolvable:$true] %s22
      %25 = dma.hbm_to_vmem [thread:$0]  %s21, 128, %s23, [#allocation4]
    $region5: #{tpu_custom_call.1} parent=1 // pred_fallthru
      _
    // Predicated region
    $region6: #{tpu_custom_call.1} parent=1 // pred_check
      _
    $region7: #{tpu_custom_call.1} parent=1 // pred_check_branch
      %27 = sbr.rel (0) target = $region9
    $region8: #{tpu_custom_call.1} parent=1 // pred_region
      %29 = vsyncadd [#allocation7], 0
      %s30 = sshll.u32 %s1, 4
      %s31 = int_to_ptr.hbm [resolvable:$true] %s30
      %s32 = sshll.u32 [#allocation6], 4
      %s33 = int_to_ptr.vmem [resolvable:$true] %s32
      %38 = dma.hbm_to_vmem [thread:$0]  %s31, 1024, %s33, [#allocation7], 256, 256, 16
    $region9: #{tpu_custom_call.1} parent=1 // pred_fallthru
      _
    // Predicated region
    $region10: #{tpu_custom_call.1} parent=1 // pred_check
      _
    $region11: #{tpu_custom_call.1} parent=1 // pred_check_branch
      %40 = sbr.rel (0) target = $region13
    $region12: #{tpu_custom_call.1} parent=1 // pred_region
      %42 = vsyncadd [#allocation7], 0
      %s43 = sshll.u32 %s2, 4
      %s44 = int_to_ptr.hbm [resolvable:$true] %s43
      %s45 = sshll.u32 [#allocation8], 4
      %s46 = int_to_ptr.vmem [resolvable:$true] %s45
      %51 = dma.hbm_to_vmem [thread:$0]  %s44, 1024, %s46, [#allocation7], 256, 256, 16
    $region13: #{tpu_custom_call.1} parent=1 // pred_fallthru
      _
    // Predicated region
    $region14: #{tpu_custom_call.1} parent=1 // pred_check
      _
    $region15: #{tpu_custom_call.1} parent=1 // pred_check_branch
      %53 = sbr.rel (0) target = $region17
    $region16: #{tpu_custom_call.1} parent=1 // pred_region
      %55 = vsyncadd [#allocation10], 0
      %s56 = sshll.u32 %s3, 4
      %s57 = int_to_ptr.hbm [resolvable:$true] %s56
      %s58 = sshll.u32 [#allocation9], 4
      %s59 = int_to_ptr.vmem [resolvable:$true] %s58
      %64 = dma.hbm_to_vmem [thread:$0]  %s57, 1024, %s59, [#allocation10], 256, 256, 16
    $region17: #{tpu_custom_call.1} parent=1 // pred_fallthru
      _
    // Predicated region
    $region18: #{tpu_custom_call.1} parent=1 // pred_check
      _
    $region19: #{tpu_custom_call.1} parent=1 // pred_check_branch
      %66 = sbr.rel (0) target = $region21
    $region20: #{tpu_custom_call.1} parent=1 // pred_region
      _
    $region21: #{tpu_custom_call.1} parent=1 // pred_fallthru
      _
    // Predicated region
    $region22: #{tpu_custom_call.1} parent=1 // pred_check
      _
    $region23: #{tpu_custom_call.1} parent=1 // pred_check_branch
      %68 = sbr.rel (0) target = $region25
    $region24: #{tpu_custom_call.1} parent=1 // pred_region
      _
    $region25: #{tpu_custom_call.1} parent=1 // pred_fallthru
      _
    // Predicated region
    $region26: #{tpu_custom_call.1} parent=1 // pred_check
      _
    $region27: #{tpu_custom_call.1} parent=1 // pred_check_branch
      %70 = sbr.rel (0) target = $region29
    $region28: #{tpu_custom_call.1} parent=1 // pred_region
      %72 = dma.done [#allocation4], 128
    $region29: #{tpu_custom_call.1} parent=1 // pred_fallthru
      _
    // Predicated region
    $region30: #{tpu_custom_call.1} parent=1 // pred_check
      _
    $region31: #{tpu_custom_call.1} parent=1 // pred_check_branch
      %74 = sbr.rel (0) target = $region33
    $region32: #{tpu_custom_call.1} parent=1 // pred_region
      %76 = dma.done [#allocation7], 1024
    $region33: #{tpu_custom_call.1} parent=1 // pred_fallthru
      _
    // Predicated region
    $region34: #{tpu_custom_call.1} parent=1 // pred_check
      _
    $region35: #{tpu_custom_call.1} parent=1 // pred_check_branch
      %78 = sbr.rel (0) target = $region37
    $region36: #{tpu_custom_call.1} parent=1 // pred_region
      %80 = dma.done [#allocation7], 1024
    $region37: #{tpu_custom_call.1} parent=1 // pred_fallthru
      _
    // Predicated region
    $region38: #{tpu_custom_call.1} parent=1 // pred_check
      _
    $region39: #{tpu_custom_call.1} parent=1 // pred_check_branch
      %82 = sbr.rel (0) target = $region41
    $region40: #{tpu_custom_call.1} parent=1 // pred_region
      %84 = dma.done [#allocation10], 1024
    $region41: #{tpu_custom_call.1} parent=1 // pred_fallthru
      _
    %p85 = scmp.eq.s32.totalorder 0, 0
    // Predicated region
    $region42: #{tpu_custom_call.1} parent=1 // pred_check
      %p86 = pneg %p85
    $region43: #{tpu_custom_call.1} parent=1 // pred_check_branch
      %88 = sbr.rel (%p86) target = $region45
    $region44: #{tpu_custom_call.1} parent=1 // pred_region
      %89 = vst [vmem:[#allocation2] sm:$0xff] 0.0
      %90 = vst [vmem:[#allocation2 + $0x8] sm:$0xff] 0.0
    $region45: #{tpu_custom_call.1} parent=1 // pred_fallthru
      _
    %v91 = vld [vmem:[#allocation3] sm:$0xff]
    %v92 = vperm.slane %v91, 0
    %v93 = vlaneseq
    %v94 = vshrl.u32 %v93, 7
    %96 = vset.pattern.permute.xlu0 %v94
    %97 = vperm.xlu0 %96, %v92
    %v98 = vpop.permute.xlu0 %97
    %v99 = vlaneseq
    %v100 = vshrl.u32 %v99, 7
    %v101 = vadd.s32 %v100, 8
    %102 = vset.pattern.permute.xlu0 %v101
    %103 = vperm.xlu0 %102, %v92
    %v104 = vpop.permute.xlu0 %103
    %v105 = vlaneseq
    %v106 = vshrl.u32 %v105, 7
    %v107 = vadd.s32 %v106, 16
    %108 = vset.pattern.permute.xlu0 %v107
    %109 = vperm.xlu0 %108, %v92
    %v110 = vpop.permute.xlu0 %109
    %v111 = vlaneseq
    %v112 = vshrl.u32 %v111, 7
    %v113 = vadd.s32 %v112, 24
    %114 = vset.pattern.permute.xlu0 %v113
    %115 = vperm.xlu0 %114, %v92
    %v116 = vpop.permute.xlu0 %115
    %v117 = vperm.slane %v91, 1
    %v118 = vlaneseq
    %v119 = vshrl.u32 %v118, 7
    %121 = vset.pattern.permute.xlu0 %v119
    %122 = vperm.xlu0 %121, %v117
    %v123 = vpop.permute.xlu0 %122
    %v124 = vlaneseq
    %v125 = vshrl.u32 %v124, 7
    %v126 = vadd.s32 %v125, 8
    %127 = vset.pattern.permute.xlu0 %v126
    %128 = vperm.xlu0 %127, %v117
    %v129 = vpop.permute.xlu0 %128
    %v130 = vlaneseq
    %v131 = vshrl.u32 %v130, 7
    %v132 = vadd.s32 %v131, 16
    %133 = vset.pattern.permute.xlu0 %v132
    %134 = vperm.xlu0 %133, %v117
    %v135 = vpop.permute.xlu0 %134
    %v136 = vlaneseq
    %v137 = vshrl.u32 %v136, 7
    %v138 = vadd.s32 %v137, 24
    %139 = vset.pattern.permute.xlu0 %v138
    %140 = vperm.xlu0 %139, %v117
    %v141 = vpop.permute.xlu0 %140
    %v142 = vperm.slane %v91, 2
    %v143 = vlaneseq
    %v144 = vshrl.u32 %v143, 7
    %146 = vset.pattern.permute.xlu0 %v144
    %147 = vperm.xlu0 %146, %v142
    %v148 = vpop.permute.xlu0 %147
    %v149 = vlaneseq
    %v150 = vshrl.u32 %v149, 7
    %v151 = vadd.s32 %v150, 8
    %152 = vset.pattern.permute.xlu0 %v151
    %153 = vperm.xlu0 %152, %v142
    %v154 = vpop.permute.xlu0 %153
    %v155 = vlaneseq
    %v156 = vshrl.u32 %v155, 7
    %v157 = vadd.s32 %v156, 16
    %158 = vset.pattern.permute.xlu0 %v157
    %159 = vperm.xlu0 %158, %v142
    %v160 = vpop.permute.xlu0 %159
    %v161 = vlaneseq
    %v162 = vshrl.u32 %v161, 7
    %v163 = vadd.s32 %v162, 24
    %164 = vset.pattern.permute.xlu0 %v163
    %165 = vperm.xlu0 %164, %v142
    %v166 = vpop.permute.xlu0 %165
    %v167 = vperm.slane %v91, 3
    %v168 = vlaneseq
    %v169 = vshrl.u32 %v168, 7
    %171 = vset.pattern.permute.xlu0 %v169
    %172 = vperm.xlu0 %171, %v167
    %v173 = vpop.permute.xlu0 %172
    %v174 = vlaneseq
    %v175 = vshrl.u32 %v174, 7
    %v176 = vadd.s32 %v175, 8
    %177 = vset.pattern.permute.xlu0 %v176
    %178 = vperm.xlu0 %177, %v167
    %v179 = vpop.permute.xlu0 %178
    %v180 = vlaneseq
    %v181 = vshrl.u32 %v180, 7
    %v182 = vadd.s32 %v181, 16
    %183 = vset.pattern.permute.xlu0 %v182
    %184 = vperm.xlu0 %183, %v167
    %v185 = vpop.permute.xlu0 %184
    %v186 = vlaneseq
    %v187 = vshrl.u32 %v186, 7
    %v188 = vadd.s32 %v187, 24
    %189 = vset.pattern.permute.xlu0 %v188
    %190 = vperm.xlu0 %189, %v167
    %v191 = vpop.permute.xlu0 %190
    %v192 = vperm.slane %v91, 4
    %v193 = vlaneseq
    %v194 = vshrl.u32 %v193, 7
    %196 = vset.pattern.permute.xlu0 %v194
    %197 = vperm.xlu0 %196, %v192
    %v198 = vpop.permute.xlu0 %197
    %v199 = vlaneseq
    %v200 = vshrl.u32 %v199, 7
    %v201 = vadd.s32 %v200, 8
    %202 = vset.pattern.permute.xlu0 %v201
    %203 = vperm.xlu0 %202, %v192
    %v204 = vpop.permute.xlu0 %203
    %v205 = vlaneseq
    %v206 = vshrl.u32 %v205, 7
    %v207 = vadd.s32 %v206, 16
    %208 = vset.pattern.permute.xlu0 %v207
    %209 = vperm.xlu0 %208, %v192
    %v210 = vpop.permute.xlu0 %209
    %v211 = vlaneseq
    %v212 = vshrl.u32 %v211, 7
    %v213 = vadd.s32 %v212, 24
    %214 = vset.pattern.permute.xlu0 %v213
    %215 = vperm.xlu0 %214, %v192
    %v216 = vpop.permute.xlu0 %215
    %v217 = vperm.slane %v91, 5
    %v218 = vlaneseq
    %v219 = vshrl.u32 %v218, 7
    %221 = vset.pattern.permute.xlu0 %v219
    %222 = vperm.xlu0 %221, %v217
    %v223 = vpop.permute.xlu0 %222
    %v224 = vlaneseq
    %v225 = vshrl.u32 %v224, 7
    %v226 = vadd.s32 %v225, 8
    %227 = vset.pattern.permute.xlu0 %v226
    %228 = vperm.xlu0 %227, %v217
    %v229 = vpop.permute.xlu0 %228
    %v230 = vlaneseq
    %v231 = vshrl.u32 %v230, 7
    %v232 = vadd.s32 %v231, 16
    %233 = vset.pattern.permute.xlu0 %v232
    %234 = vperm.xlu0 %233, %v217
    %v235 = vpop.permute.xlu0 %234
    %v236 = vlaneseq
    %v237 = vshrl.u32 %v236, 7
    %v238 = vadd.s32 %v237, 24
    %239 = vset.pattern.permute.xlu0 %v238
    %240 = vperm.xlu0 %239, %v217
    %v241 = vpop.permute.xlu0 %240
    %v242 = vperm.slane %v91, 6
    %v243 = vlaneseq
    %v244 = vshrl.u32 %v243, 7
    %246 = vset.pattern.permute.xlu0 %v244
    %247 = vperm.xlu0 %246, %v242
    %v248 = vpop.permute.xlu0 %247
    %v249 = vlaneseq
    %v250 = vshrl.u32 %v249, 7
    %v251 = vadd.s32 %v250, 8
    %252 = vset.pattern.permute.xlu0 %v251
    %253 = vperm.xlu0 %252, %v242
    %v254 = vpop.permute.xlu0 %253
    %v255 = vlaneseq
    %v256 = vshrl.u32 %v255, 7
    %v257 = vadd.s32 %v256, 16
    %258 = vset.pattern.permute.xlu0 %v257
    %259 = vperm.xlu0 %258, %v242
    %v260 = vpop.permute.xlu0 %259
    %v261 = vlaneseq
    %v262 = vshrl.u32 %v261, 7
    %v263 = vadd.s32 %v262, 24
    %264 = vset.pattern.permute.xlu0 %v263
    %265 = vperm.xlu0 %264, %v242
    %v266 = vpop.permute.xlu0 %265
    %v267 = vperm.slane %v91, 7
    %v268 = vlaneseq
    %v269 = vshrl.u32 %v268, 7
    %271 = vset.pattern.permute.xlu0 %v269
    %272 = vperm.xlu0 %271, %v267
    %v273 = vpop.permute.xlu0 %272
    %v274 = vlaneseq
    %v275 = vshrl.u32 %v274, 7
    %v276 = vadd.s32 %v275, 8
    %277 = vset.pattern.permute.xlu0 %v276
    %278 = vperm.xlu0 %277, %v267
    %v279 = vpop.permute.xlu0 %278
    %v280 = vlaneseq
    %v281 = vshrl.u32 %v280, 7
    %v282 = vadd.s32 %v281, 16
    %283 = vset.pattern.permute.xlu0 %v282
    %284 = vperm.xlu0 %283, %v267
    %v285 = vpop.permute.xlu0 %284
    %v286 = vlaneseq
    %v287 = vshrl.u32 %v286, 7
    %v288 = vadd.s32 %v287, 24
    %289 = vset.pattern.permute.xlu0 %v288
    %290 = vperm.xlu0 %289, %v267
    %v291 = vpop.permute.xlu0 %290
    %v292 = vld [vmem:[#allocation6] sm:$0xff]
    %v293 = vld [vmem:[#allocation6 + $0x8] sm:$0xff]
    %v294 = vld [vmem:[#allocation6 + $0x10] sm:$0xff]
    %v295 = vld [vmem:[#allocation6 + $0x18] sm:$0xff]
    %v296 = vld [vmem:[#allocation6 + $0x20] sm:$0xff]
    %v297 = vld [vmem:[#allocation6 + $0x28] sm:$0xff]
    %v298 = vld [vmem:[#allocation6 + $0x30] sm:$0xff]
    %v299 = vld [vmem:[#allocation6 + $0x38] sm:$0xff]
    %v300 = vld [vmem:[#allocation8] sm:$0xff]
    %v301 = vld [vmem:[#allocation8 + $0x8] sm:$0xff]
    %v302 = vld [vmem:[#allocation8 + $0x10] sm:$0xff]
    %v303 = vld [vmem:[#allocation8 + $0x18] sm:$0xff]
    %v304 = vld [vmem:[#allocation8 + $0x20] sm:$0xff]
    %v305 = vld [vmem:[#allocation8 + $0x28] sm:$0xff]
    %v306 = vld [vmem:[#allocation8 + $0x30] sm:$0xff]
    %v307 = vld [vmem:[#allocation8 + $0x38] sm:$0xff]
    %v308 = vld [vmem:[#allocation9] sm:$0xff]
    %v309 = vld [vmem:[#allocation9 + $0x8] sm:$0xff]
    %v310 = vld [vmem:[#allocation9 + $0x10] sm:$0xff]
    %v311 = vld [vmem:[#allocation9 + $0x18] sm:$0xff]
    %v312 = vld [vmem:[#allocation9 + $0x20] sm:$0xff]
    %v313 = vld [vmem:[#allocation9 + $0x28] sm:$0xff]
    %v314 = vld [vmem:[#allocation9 + $0x30] sm:$0xff]
    %v315 = vld [vmem:[#allocation9 + $0x38] sm:$0xff]
    %v316 = vsub.f32 %v98, %v300
    %v317 = vsub.f32 %v98, %v301
    %v318 = vsub.f32 %v104, %v302
    %v319 = vsub.f32 %v104, %v303
    %v320 = vsub.f32 %v110, %v304
    %v321 = vsub.f32 %v110, %v305
    %v322 = vsub.f32 %v116, %v306
    %v323 = vsub.f32 %v116, %v307
    %v324 = vsub.f32 %v123, %v300
    %v325 = vsub.f32 %v123, %v301
    %v326 = vsub.f32 %v129, %v302
    %v327 = vsub.f32 %v129, %v303
    %v328 = vsub.f32 %v135, %v304
    %v329 = vsub.f32 %v135, %v305
    %v330 = vsub.f32 %v141, %v306
    %v331 = vsub.f32 %v141, %v307
    %v332 = vsub.f32 %v148, %v300
    %v333 = vsub.f32 %v148, %v301
    %v334 = vsub.f32 %v154, %v302
    %v335 = vsub.f32 %v154, %v303
    %v336 = vsub.f32 %v160, %v304
    %v337 = vsub.f32 %v160, %v305
    %v338 = vsub.f32 %v166, %v306
    %v339 = vsub.f32 %v166, %v307
    %v340 = vsub.f32 %v173, %v300
    %v341 = vsub.f32 %v173, %v301
    %v342 = vsub.f32 %v179, %v302
    %v343 = vsub.f32 %v179, %v303
    %v344 = vsub.f32 %v185, %v304
    %v345 = vsub.f32 %v185, %v305
    %v346 = vsub.f32 %v191, %v306
    %v347 = vsub.f32 %v191, %v307
    %v348 = vsub.f32 %v198, %v300
    %v349 = vsub.f32 %v198, %v301
    %v350 = vsub.f32 %v204, %v302
    %v351 = vsub.f32 %v204, %v303
    %v352 = vsub.f32 %v210, %v304
    %v353 = vsub.f32 %v210, %v305
    %v354 = vsub.f32 %v216, %v306
    %v355 = vsub.f32 %v216, %v307
    %v356 = vsub.f32 %v223, %v300
    %v357 = vsub.f32 %v223, %v301
    %v358 = vsub.f32 %v229, %v302
    %v359 = vsub.f32 %v229, %v303
    %v360 = vsub.f32 %v235, %v304
    %v361 = vsub.f32 %v235, %v305
    %v362 = vsub.f32 %v241, %v306
    %v363 = vsub.f32 %v241, %v307
    %v364 = vsub.f32 %v248, %v300
    %v365 = vsub.f32 %v248, %v301
    %v366 = vsub.f32 %v254, %v302
    %v367 = vsub.f32 %v254, %v303
    %v368 = vsub.f32 %v260, %v304
    %v369 = vsub.f32 %v260, %v305
    %v370 = vsub.f32 %v266, %v306
    %v371 = vsub.f32 %v266, %v307
    %v372 = vsub.f32 %v273, %v300
    %v373 = vsub.f32 %v273, %v301
    %v374 = vsub.f32 %v279, %v302
    %v375 = vsub.f32 %v279, %v303
    %v376 = vsub.f32 %v285, %v304
    %v377 = vsub.f32 %v285, %v305
    %v378 = vsub.f32 %v291, %v306
    %v379 = vsub.f32 %v291, %v307
    %v380 = vmul.f32 %v316, %v292
    %v381 = vmul.f32 %v317, %v293
    %v382 = vmul.f32 %v318, %v294
    %v383 = vmul.f32 %v319, %v295
    %v384 = vmul.f32 %v320, %v296
    %v385 = vmul.f32 %v321, %v297
    %v386 = vmul.f32 %v322, %v298
    %v387 = vmul.f32 %v323, %v299
    %v388 = vmul.f32 %v324, %v292
    %v389 = vmul.f32 %v325, %v293
    %v390 = vmul.f32 %v326, %v294
    %v391 = vmul.f32 %v327, %v295
    %v392 = vmul.f32 %v328, %v296
    %v393 = vmul.f32 %v329, %v297
    %v394 = vmul.f32 %v330, %v298
    %v395 = vmul.f32 %v331, %v299
    %v396 = vmul.f32 %v332, %v292
    %v397 = vmul.f32 %v333, %v293
    %v398 = vmul.f32 %v334, %v294
    %v399 = vmul.f32 %v335, %v295
    %v400 = vmul.f32 %v336, %v296
    %v401 = vmul.f32 %v337, %v297
    %v402 = vmul.f32 %v338, %v298
    %v403 = vmul.f32 %v339, %v299
    %v404 = vmul.f32 %v340, %v292
    %v405 = vmul.f32 %v341, %v293
    %v406 = vmul.f32 %v342, %v294
    %v407 = vmul.f32 %v343, %v295
    %v408 = vmul.f32 %v344, %v296
    %v409 = vmul.f32 %v345, %v297
    %v410 = vmul.f32 %v346, %v298
    %v411 = vmul.f32 %v347, %v299
    %v412 = vmul.f32 %v348, %v292
    %v413 = vmul.f32 %v349, %v293
    %v414 = vmul.f32 %v350, %v294
    %v415 = vmul.f32 %v351, %v295
    %v416 = vmul.f32 %v352, %v296
    %v417 = vmul.f32 %v353, %v297
    %v418 = vmul.f32 %v354, %v298
    %v419 = vmul.f32 %v355, %v299
    %v420 = vmul.f32 %v356, %v292
    %v421 = vmul.f32 %v357, %v293
    %v422 = vmul.f32 %v358, %v294
    %v423 = vmul.f32 %v359, %v295
    %v424 = vmul.f32 %v360, %v296
    %v425 = vmul.f32 %v361, %v297
    %v426 = vmul.f32 %v362, %v298
    %v427 = vmul.f32 %v363, %v299
    %v428 = vmul.f32 %v364, %v292
    %v429 = vmul.f32 %v365, %v293
    %v430 = vmul.f32 %v366, %v294
    %v431 = vmul.f32 %v367, %v295
    %v432 = vmul.f32 %v368, %v296
    %v433 = vmul.f32 %v369, %v297
    %v434 = vmul.f32 %v370, %v298
    %v435 = vmul.f32 %v371, %v299
    %v436 = vmul.f32 %v372, %v292
    %v437 = vmul.f32 %v373, %v293
    %v438 = vmul.f32 %v374, %v294
    %v439 = vmul.f32 %v375, %v295
    %v440 = vmul.f32 %v376, %v296
    %v441 = vmul.f32 %v377, %v297
    %v442 = vmul.f32 %v378, %v298
    %v443 = vmul.f32 %v379, %v299
    %v444 = vmul.f32 %v380, %v380
    %v445 = vmul.f32 %v381, %v381
    %v446 = vmul.f32 %v382, %v382
    %v447 = vmul.f32 %v383, %v383
    %v448 = vmul.f32 %v384, %v384
    %v449 = vmul.f32 %v385, %v385
    %v450 = vmul.f32 %v386, %v386
    %v451 = vmul.f32 %v387, %v387
    %v452 = vmul.f32 %v388, %v388
    %v453 = vmul.f32 %v389, %v389
    %v454 = vmul.f32 %v390, %v390
    %v455 = vmul.f32 %v391, %v391
    %v456 = vmul.f32 %v392, %v392
    %v457 = vmul.f32 %v393, %v393
    %v458 = vmul.f32 %v394, %v394
    %v459 = vmul.f32 %v395, %v395
    %v460 = vmul.f32 %v396, %v396
    %v461 = vmul.f32 %v397, %v397
    %v462 = vmul.f32 %v398, %v398
    %v463 = vmul.f32 %v399, %v399
    %v464 = vmul.f32 %v400, %v400
    %v465 = vmul.f32 %v401, %v401
    %v466 = vmul.f32 %v402, %v402
    %v467 = vmul.f32 %v403, %v403
    %v468 = vmul.f32 %v404, %v404
    %v469 = vmul.f32 %v405, %v405
    %v470 = vmul.f32 %v406, %v406
    %v471 = vmul.f32 %v407, %v407
    %v472 = vmul.f32 %v408, %v408
    %v473 = vmul.f32 %v409, %v409
    %v474 = vmul.f32 %v410, %v410
    %v475 = vmul.f32 %v411, %v411
    %v476 = vmul.f32 %v412, %v412
    %v477 = vmul.f32 %v413, %v413
    %v478 = vmul.f32 %v414, %v414
    %v479 = vmul.f32 %v415, %v415
    %v480 = vmul.f32 %v416, %v416
    %v481 = vmul.f32 %v417, %v417
    %v482 = vmul.f32 %v418, %v418
    %v483 = vmul.f32 %v419, %v419
    %v484 = vmul.f32 %v420, %v420
    %v485 = vmul.f32 %v421, %v421
    %v486 = vmul.f32 %v422, %v422
    %v487 = vmul.f32 %v423, %v423
    %v488 = vmul.f32 %v424, %v424
    %v489 = vmul.f32 %v425, %v425
    %v490 = vmul.f32 %v426, %v426
    %v491 = vmul.f32 %v427, %v427
    %v492 = vmul.f32 %v428, %v428
    %v493 = vmul.f32 %v429, %v429
    %v494 = vmul.f32 %v430, %v430
    %v495 = vmul.f32 %v431, %v431
    %v496 = vmul.f32 %v432, %v432
    %v497 = vmul.f32 %v433, %v433
    %v498 = vmul.f32 %v434, %v434
    %v499 = vmul.f32 %v435, %v435
    %v500 = vmul.f32 %v436, %v436
    %v501 = vmul.f32 %v437, %v437
    %v502 = vmul.f32 %v438, %v438
    %v503 = vmul.f32 %v439, %v439
    %v504 = vmul.f32 %v440, %v440
    %v505 = vmul.f32 %v441, %v441
    %v506 = vmul.f32 %v442, %v442
    %v507 = vmul.f32 %v443, %v443
    %v508 = vsub.f32 %v444, 1.0
    %v509 = vsub.f32 %v445, 1.0
    %v510 = vsub.f32 %v446, 1.0
    %v511 = vsub.f32 %v447, 1.0
    %v512 = vsub.f32 %v448, 1.0
    %v513 = vsub.f32 %v449, 1.0
    %v514 = vsub.f32 %v450, 1.0
    %v515 = vsub.f32 %v451, 1.0
    %v516 = vsub.f32 %v452, 1.0
    %v517 = vsub.f32 %v453, 1.0
    %v518 = vsub.f32 %v454, 1.0
    %v519 = vsub.f32 %v455, 1.0
    %v520 = vsub.f32 %v456, 1.0
    %v521 = vsub.f32 %v457, 1.0
    %v522 = vsub.f32 %v458, 1.0
    %v523 = vsub.f32 %v459, 1.0
    %v524 = vsub.f32 %v460, 1.0
    %v525 = vsub.f32 %v461, 1.0
    %v526 = vsub.f32 %v462, 1.0
    %v527 = vsub.f32 %v463, 1.0
    %v528 = vsub.f32 %v464, 1.0
    %v529 = vsub.f32 %v465, 1.0
    %v530 = vsub.f32 %v466, 1.0
    %v531 = vsub.f32 %v467, 1.0
    %v532 = vsub.f32 %v468, 1.0
    %v533 = vsub.f32 %v469, 1.0
    %v534 = vsub.f32 %v470, 1.0
    %v535 = vsub.f32 %v471, 1.0
    %v536 = vsub.f32 %v472, 1.0
    %v537 = vsub.f32 %v473, 1.0
    %v538 = vsub.f32 %v474, 1.0
    %v539 = vsub.f32 %v475, 1.0
    %v540 = vsub.f32 %v476, 1.0
    %v541 = vsub.f32 %v477, 1.0
    %v542 = vsub.f32 %v478, 1.0
    %v543 = vsub.f32 %v479, 1.0
    %v544 = vsub.f32 %v480, 1.0
    %v545 = vsub.f32 %v481, 1.0
    %v546 = vsub.f32 %v482, 1.0
    %v547 = vsub.f32 %v483, 1.0
    %v548 = vsub.f32 %v484, 1.0
    %v549 = vsub.f32 %v485, 1.0
    %v550 = vsub.f32 %v486, 1.0
    %v551 = vsub.f32 %v487, 1.0
    %v552 = vsub.f32 %v488, 1.0
    %v553 = vsub.f32 %v489, 1.0
    %v554 = vsub.f32 %v490, 1.0
    %v555 = vsub.f32 %v491, 1.0
    %v556 = vsub.f32 %v492, 1.0
    %v557 = vsub.f32 %v493, 1.0
    %v558 = vsub.f32 %v494, 1.0
    %v559 = vsub.f32 %v495, 1.0
    %v560 = vsub.f32 %v496, 1.0
    %v561 = vsub.f32 %v497, 1.0
    %v562 = vsub.f32 %v498, 1.0
    %v563 = vsub.f32 %v499, 1.0
    %v564 = vsub.f32 %v500, 1.0
    %v565 = vsub.f32 %v501, 1.0
    %v566 = vsub.f32 %v502, 1.0
    %v567 = vsub.f32 %v503, 1.0
    %v568 = vsub.f32 %v504, 1.0
    %v569 = vsub.f32 %v505, 1.0
    %v570 = vsub.f32 %v506, 1.0
    %v571 = vsub.f32 %v507, 1.0
    %v572 = vmul.f32 %v444, -0.5
    %v573 = vmul.f32 %v445, -0.5
    %v574 = vmul.f32 %v446, -0.5
    %v575 = vmul.f32 %v447, -0.5
    %v576 = vmul.f32 %v448, -0.5
    %v577 = vmul.f32 %v449, -0.5
    %v578 = vmul.f32 %v450, -0.5
    %v579 = vmul.f32 %v451, -0.5
    %v580 = vmul.f32 %v452, -0.5
    %v581 = vmul.f32 %v453, -0.5
    %v582 = vmul.f32 %v454, -0.5
    %v583 = vmul.f32 %v455, -0.5
    %v584 = vmul.f32 %v456, -0.5
    %v585 = vmul.f32 %v457, -0.5
    %v586 = vmul.f32 %v458, -0.5
    %v587 = vmul.f32 %v459, -0.5
    %v588 = vmul.f32 %v460, -0.5
    %v589 = vmul.f32 %v461, -0.5
    %v590 = vmul.f32 %v462, -0.5
    %v591 = vmul.f32 %v463, -0.5
    %v592 = vmul.f32 %v464, -0.5
    %v593 = vmul.f32 %v465, -0.5
    %v594 = vmul.f32 %v466, -0.5
    %v595 = vmul.f32 %v467, -0.5
    %v596 = vmul.f32 %v468, -0.5
    %v597 = vmul.f32 %v469, -0.5
    %v598 = vmul.f32 %v470, -0.5
    %v599 = vmul.f32 %v471, -0.5
    %v600 = vmul.f32 %v472, -0.5
    %v601 = vmul.f32 %v473, -0.5
    %v602 = vmul.f32 %v474, -0.5
    %v603 = vmul.f32 %v475, -0.5
    %v604 = vmul.f32 %v476, -0.5
    %v605 = vmul.f32 %v477, -0.5
    %v606 = vmul.f32 %v478, -0.5
    %v607 = vmul.f32 %v479, -0.5
    %v608 = vmul.f32 %v480, -0.5
    %v609 = vmul.f32 %v481, -0.5
    %v610 = vmul.f32 %v482, -0.5
    %v611 = vmul.f32 %v483, -0.5
    %v612 = vmul.f32 %v484, -0.5
    %v613 = vmul.f32 %v485, -0.5
    %v614 = vmul.f32 %v486, -0.5
    %v615 = vmul.f32 %v487, -0.5
    %v616 = vmul.f32 %v488, -0.5
    %v617 = vmul.f32 %v489, -0.5
    %v618 = vmul.f32 %v490, -0.5
    %v619 = vmul.f32 %v491, -0.5
    %v620 = vmul.f32 %v492, -0.5
    %v621 = vmul.f32 %v493, -0.5
    %v622 = vmul.f32 %v494, -0.5
    %v623 = vmul.f32 %v495, -0.5
    %v624 = vmul.f32 %v496, -0.5
    %v625 = vmul.f32 %v497, -0.5
    %v626 = vmul.f32 %v498, -0.5
    %v627 = vmul.f32 %v499, -0.5
    %v628 = vmul.f32 %v500, -0.5
    %v629 = vmul.f32 %v501, -0.5
    %v630 = vmul.f32 %v502, -0.5
    %v631 = vmul.f32 %v503, -0.5
    %v632 = vmul.f32 %v504, -0.5
    %v633 = vmul.f32 %v505, -0.5
    %v634 = vmul.f32 %v506, -0.5
    %v635 = vmul.f32 %v507, -0.5
    %v636 = vmul.f32 %v572, 1.442695
    %v637 = vpow.pop %v636
    %v638 = vmul.f32 %v573, 1.442695
    %v639 = vpow.pop %v638
    %v640 = vmul.f32 %v574, 1.442695
    %v641 = vpow.pop %v640
    %v642 = vmul.f32 %v575, 1.442695
    %v643 = vpow.pop %v642
    %v644 = vmul.f32 %v576, 1.442695
    %v645 = vpow.pop %v644
    %v646 = vmul.f32 %v577, 1.442695
    %v647 = vpow.pop %v646
    %v648 = vmul.f32 %v578, 1.442695
    %v649 = vpow.pop %v648
    %v650 = vmul.f32 %v579, 1.442695
    %v651 = vpow.pop %v650
    %v652 = vmul.f32 %v580, 1.442695
    %v653 = vpow.pop %v652
    %v654 = vmul.f32 %v581, 1.442695
    %v655 = vpow.pop %v654
    %v656 = vmul.f32 %v582, 1.442695
    %v657 = vpow.pop %v656
    %v658 = vmul.f32 %v583, 1.442695
    %v659 = vpow.pop %v658
    %v660 = vmul.f32 %v584, 1.442695
    %v661 = vpow.pop %v660
    %v662 = vmul.f32 %v585, 1.442695
    %v663 = vpow.pop %v662
    %v664 = vmul.f32 %v586, 1.442695
    %v665 = vpow.pop %v664
    %v666 = vmul.f32 %v587, 1.442695
    %v667 = vpow.pop %v666
    %v668 = vmul.f32 %v588, 1.442695
    %v669 = vpow.pop %v668
    %v670 = vmul.f32 %v589, 1.442695
    %v671 = vpow.pop %v670
    %v672 = vmul.f32 %v590, 1.442695
    %v673 = vpow.pop %v672
    %v674 = vmul.f32 %v591, 1.442695
    %v675 = vpow.pop %v674
    %v676 = vmul.f32 %v592, 1.442695
    %v677 = vpow.pop %v676
    %v678 = vmul.f32 %v593, 1.442695
    %v679 = vpow.pop %v678
    %v680 = vmul.f32 %v594, 1.442695
    %v681 = vpow.pop %v680
    %v682 = vmul.f32 %v595, 1.442695
    %v683 = vpow.pop %v682
    %v684 = vmul.f32 %v596, 1.442695
    %v685 = vpow.pop %v684
    %v686 = vmul.f32 %v597, 1.442695
    %v687 = vpow.pop %v686
    %v688 = vmul.f32 %v598, 1.442695
    %v689 = vpow.pop %v688
    %v690 = vmul.f32 %v599, 1.442695
    %v691 = vpow.pop %v690
    %v692 = vmul.f32 %v600, 1.442695
    %v693 = vpow.pop %v692
    %v694 = vmul.f32 %v601, 1.442695
    %v695 = vpow.pop %v694
    %v696 = vmul.f32 %v602, 1.442695
    %v697 = vpow.pop %v696
    %v698 = vmul.f32 %v603, 1.442695
    %v699 = vpow.pop %v698
    %v700 = vmul.f32 %v604, 1.442695
    %v701 = vpow.pop %v700
    %v702 = vmul.f32 %v605, 1.442695
    %v703 = vpow.pop %v702
    %v704 = vmul.f32 %v606, 1.442695
    %v705 = vpow.pop %v704
    %v706 = vmul.f32 %v607, 1.442695
    %v707 = vpow.pop %v706
    %v708 = vmul.f32 %v608, 1.442695
    %v709 = vpow.pop %v708
    %v710 = vmul.f32 %v609, 1.442695
    %v711 = vpow.pop %v710
    %v712 = vmul.f32 %v610, 1.442695
    %v713 = vpow.pop %v712
    %v714 = vmul.f32 %v611, 1.442695
    %v715 = vpow.pop %v714
    %v716 = vmul.f32 %v612, 1.442695
    %v717 = vpow.pop %v716
    %v718 = vmul.f32 %v613, 1.442695
    %v719 = vpow.pop %v718
    %v720 = vmul.f32 %v614, 1.442695
    %v721 = vpow.pop %v720
    %v722 = vmul.f32 %v615, 1.442695
    %v723 = vpow.pop %v722
    %v724 = vmul.f32 %v616, 1.442695
    %v725 = vpow.pop %v724
    %v726 = vmul.f32 %v617, 1.442695
    %v727 = vpow.pop %v726
    %v728 = vmul.f32 %v618, 1.442695
    %v729 = vpow.pop %v728
    %v730 = vmul.f32 %v619, 1.442695
    %v731 = vpow.pop %v730
    %v732 = vmul.f32 %v620, 1.442695
    %v733 = vpow.pop %v732
    %v734 = vmul.f32 %v621, 1.442695
    %v735 = vpow.pop %v734
    %v736 = vmul.f32 %v622, 1.442695
    %v737 = vpow.pop %v736
    %v738 = vmul.f32 %v623, 1.442695
    %v739 = vpow.pop %v738
    %v740 = vmul.f32 %v624, 1.442695
    %v741 = vpow.pop %v740
    %v742 = vmul.f32 %v625, 1.442695
    %v743 = vpow.pop %v742
    %v744 = vmul.f32 %v626, 1.442695
    %v745 = vpow.pop %v744
    %v746 = vmul.f32 %v627, 1.442695
    %v747 = vpow.pop %v746
    %v748 = vmul.f32 %v628, 1.442695
    %v749 = vpow.pop %v748
    %v750 = vmul.f32 %v629, 1.442695
    %v751 = vpow.pop %v750
    %v752 = vmul.f32 %v630, 1.442695
    %v753 = vpow.pop %v752
    %v754 = vmul.f32 %v631, 1.442695
    %v755 = vpow.pop %v754
    %v756 = vmul.f32 %v632, 1.442695
    %v757 = vpow.pop %v756
    %v758 = vmul.f32 %v633, 1.442695
    %v759 = vpow.pop %v758
    %v760 = vmul.f32 %v634, 1.442695
    %v761 = vpow.pop %v760
    %v762 = vmul.f32 %v635, 1.442695
    %v763 = vpow.pop %v762
    %v764 = vmul.f32 %v508, %v637
    %v765 = vmul.f32 %v509, %v639
    %v766 = vmul.f32 %v510, %v641
    %v767 = vmul.f32 %v511, %v643
    %v768 = vmul.f32 %v512, %v645
    %v769 = vmul.f32 %v513, %v647
    %v770 = vmul.f32 %v514, %v649
    %v771 = vmul.f32 %v515, %v651
    %v772 = vmul.f32 %v516, %v653
    %v773 = vmul.f32 %v517, %v655
    %v774 = vmul.f32 %v518, %v657
    %v775 = vmul.f32 %v519, %v659
    %v776 = vmul.f32 %v520, %v661
    %v777 = vmul.f32 %v521, %v663
    %v778 = vmul.f32 %v522, %v665
    %v779 = vmul.f32 %v523, %v667
    %v780 = vmul.f32 %v524, %v669
    %v781 = vmul.f32 %v525, %v671
    %v782 = vmul.f32 %v526, %v673
    %v783 = vmul.f32 %v527, %v675
    %v784 = vmul.f32 %v528, %v677
    %v785 = vmul.f32 %v529, %v679
    %v786 = vmul.f32 %v530, %v681
    %v787 = vmul.f32 %v531, %v683
    %v788 = vmul.f32 %v532, %v685
    %v789 = vmul.f32 %v533, %v687
    %v790 = vmul.f32 %v534, %v689
    %v791 = vmul.f32 %v535, %v691
    %v792 = vmul.f32 %v536, %v693
    %v793 = vmul.f32 %v537, %v695
    %v794 = vmul.f32 %v538, %v697
    %v795 = vmul.f32 %v539, %v699
    %v796 = vmul.f32 %v540, %v701
    %v797 = vmul.f32 %v541, %v703
    %v798 = vmul.f32 %v542, %v705
    %v799 = vmul.f32 %v543, %v707
    %v800 = vmul.f32 %v544, %v709
    %v801 = vmul.f32 %v545, %v711
    %v802 = vmul.f32 %v546, %v713
    %v803 = vmul.f32 %v547, %v715
    %v804 = vmul.f32 %v548, %v717
    %v805 = vmul.f32 %v549, %v719
    %v806 = vmul.f32 %v550, %v721
    %v807 = vmul.f32 %v551, %v723
    %v808 = vmul.f32 %v552, %v725
    %v809 = vmul.f32 %v553, %v727
    %v810 = vmul.f32 %v554, %v729
    %v811 = vmul.f32 %v555, %v731
    %v812 = vmul.f32 %v556, %v733
    %v813 = vmul.f32 %v557, %v735
    %v814 = vmul.f32 %v558, %v737
    %v815 = vmul.f32 %v559, %v739
    %v816 = vmul.f32 %v560, %v741
    %v817 = vmul.f32 %v561, %v743
    %v818 = vmul.f32 %v562, %v745
    %v819 = vmul.f32 %v563, %v747
    %v820 = vmul.f32 %v564, %v749
    %v821 = vmul.f32 %v565, %v751
    %v822 = vmul.f32 %v566, %v753
    %v823 = vmul.f32 %v567, %v755
    %v824 = vmul.f32 %v568, %v757
    %v825 = vmul.f32 %v569, %v759
    %v826 = vmul.f32 %v570, %v761
    %v827 = vmul.f32 %v571, %v763
    %v828 = vmul.f32 %v764, %v308
    %v829 = vmul.f32 %v765, %v309
    %v830 = vmul.f32 %v766, %v310
    %v831 = vmul.f32 %v767, %v311
    %v832 = vmul.f32 %v768, %v312
    %v833 = vmul.f32 %v769, %v313
    %v834 = vmul.f32 %v770, %v314
    %v835 = vmul.f32 %v771, %v315
    %v836 = vmul.f32 %v772, %v308
    %v837 = vmul.f32 %v773, %v309
    %v838 = vmul.f32 %v774, %v310
    %v839 = vmul.f32 %v775, %v311
    %v840 = vmul.f32 %v776, %v312
    %v841 = vmul.f32 %v777, %v313
    %v842 = vmul.f32 %v778, %v314
    %v843 = vmul.f32 %v779, %v315
    %v844 = vmul.f32 %v780, %v308
    %v845 = vmul.f32 %v781, %v309
    %v846 = vmul.f32 %v782, %v310
    %v847 = vmul.f32 %v783, %v311
    %v848 = vmul.f32 %v784, %v312
    %v849 = vmul.f32 %v785, %v313
    %v850 = vmul.f32 %v786, %v314
    %v851 = vmul.f32 %v787, %v315
    %v852 = vmul.f32 %v788, %v308
    %v853 = vmul.f32 %v789, %v309
    %v854 = vmul.f32 %v790, %v310
    %v855 = vmul.f32 %v791, %v311
    %v856 = vmul.f32 %v792, %v312
    %v857 = vmul.f32 %v793, %v313
    %v858 = vmul.f32 %v794, %v314
    %v859 = vmul.f32 %v795, %v315
    %v860 = vmul.f32 %v796, %v308
    %v861 = vmul.f32 %v797, %v309
    %v862 = vmul.f32 %v798, %v310
    %v863 = vmul.f32 %v799, %v311
    %v864 = vmul.f32 %v800, %v312
    %v865 = vmul.f32 %v801, %v313
    %v866 = vmul.f32 %v802, %v314
    %v867 = vmul.f32 %v803, %v315
    %v868 = vmul.f32 %v804, %v308
    %v869 = vmul.f32 %v805, %v309
    %v870 = vmul.f32 %v806, %v310
    %v871 = vmul.f32 %v807, %v311
    %v872 = vmul.f32 %v808, %v312
    %v873 = vmul.f32 %v809, %v313
    %v874 = vmul.f32 %v810, %v314
    %v875 = vmul.f32 %v811, %v315
    %v876 = vmul.f32 %v812, %v308
    %v877 = vmul.f32 %v813, %v309
    %v878 = vmul.f32 %v814, %v310
    %v879 = vmul.f32 %v815, %v311
    %v880 = vmul.f32 %v816, %v312
    %v881 = vmul.f32 %v817, %v313
    %v882 = vmul.f32 %v818, %v314
    %v883 = vmul.f32 %v819, %v315
    %v884 = vmul.f32 %v820, %v308
    %v885 = vmul.f32 %v821, %v309
    %v886 = vmul.f32 %v822, %v310
    %v887 = vmul.f32 %v823, %v311
    %v888 = vmul.f32 %v824, %v312
    %v889 = vmul.f32 %v825, %v313
    %v890 = vmul.f32 %v826, %v314
    %v891 = vmul.f32 %v827, %v315
    %v892 = vld [vmem:[#allocation2] sm:$0xff]
    %v893 = vld [vmem:[#allocation2 + $0x8] sm:$0xff]
    %v894 = vadd.f32 %v828, %v830
    %v895 = vadd.f32 %v894, %v832
    %v896 = vadd.f32 %v895, %v834
    %v897 = vrot.slane %v896, 4
    %v898 = vadd.f32 %v896, %v897
    %v899 = vrot.slane %v898, 2
    %v900 = vadd.f32 %v898, %v899
    %v901 = vrot.slane %v900, 1
    %v902 = vadd.f32 %v900, %v901
    %v903 = vadd.f32 %v829, %v831
    %v904 = vadd.f32 %v903, %v833
    %v905 = vadd.f32 %v904, %v835
    %v906 = vrot.slane %v905, 4
    %v907 = vadd.f32 %v905, %v906
    %v908 = vrot.slane %v907, 2
    %v909 = vadd.f32 %v907, %v908
    %v910 = vrot.slane %v909, 1
    %v911 = vadd.f32 %v909, %v910
    %v912 = vadd.f32 %v836, %v838
    %v913 = vadd.f32 %v912, %v840
    %v914 = vadd.f32 %v913, %v842
    %v915 = vrot.slane %v914, 4
    %v916 = vadd.f32 %v914, %v915
    %v917 = vrot.slane %v916, 2
    %v918 = vadd.f32 %v916, %v917
    %v919 = vrot.slane %v918, 1
    %v920 = vadd.f32 %v918, %v919
    %v921 = vadd.f32 %v837, %v839
    %v922 = vadd.f32 %v921, %v841
    %v923 = vadd.f32 %v922, %v843
    %v924 = vrot.slane %v923, 4
    %v925 = vadd.f32 %v923, %v924
    %v926 = vrot.slane %v925, 2
    %v927 = vadd.f32 %v925, %v926
    %v928 = vrot.slane %v927, 1
    %v929 = vadd.f32 %v927, %v928
    %v930 = vadd.f32 %v844, %v846
    %v931 = vadd.f32 %v930, %v848
    %v932 = vadd.f32 %v931, %v850
    %v933 = vrot.slane %v932, 4
    %v934 = vadd.f32 %v932, %v933
    %v935 = vrot.slane %v934, 2
    %v936 = vadd.f32 %v934, %v935
    %v937 = vrot.slane %v936, 1
    %v938 = vadd.f32 %v936, %v937
    %v939 = vadd.f32 %v845, %v847
    %v940 = vadd.f32 %v939, %v849
    %v941 = vadd.f32 %v940, %v851
    %v942 = vrot.slane %v941, 4
    %v943 = vadd.f32 %v941, %v942
    %v944 = vrot.slane %v943, 2
    %v945 = vadd.f32 %v943, %v944
    %v946 = vrot.slane %v945, 1
    %v947 = vadd.f32 %v945, %v946
    %v948 = vadd.f32 %v852, %v854
    %v949 = vadd.f32 %v948, %v856
    %v950 = vadd.f32 %v949, %v858
    %v951 = vrot.slane %v950, 4
    %v952 = vadd.f32 %v950, %v951
    %v953 = vrot.slane %v952, 2
    %v954 = vadd.f32 %v952, %v953
    %v955 = vrot.slane %v954, 1
    %v956 = vadd.f32 %v954, %v955
    %v957 = vadd.f32 %v853, %v855
    %v958 = vadd.f32 %v957, %v857
    %v959 = vadd.f32 %v958, %v859
    %v960 = vrot.slane %v959, 4
    %v961 = vadd.f32 %v959, %v960
    %v962 = vrot.slane %v961, 2
    %v963 = vadd.f32 %v961, %v962
    %v964 = vrot.slane %v963, 1
    %v965 = vadd.f32 %v963, %v964
    %v966 = vadd.f32 %v860, %v862
    %v967 = vadd.f32 %v966, %v864
    %v968 = vadd.f32 %v967, %v866
    %v969 = vrot.slane %v968, 4
    %v970 = vadd.f32 %v968, %v969
    %v971 = vrot.slane %v970, 2
    %v972 = vadd.f32 %v970, %v971
    %v973 = vrot.slane %v972, 1
    %v974 = vadd.f32 %v972, %v973
    %v975 = vadd.f32 %v861, %v863
    %v976 = vadd.f32 %v975, %v865
    %v977 = vadd.f32 %v976, %v867
    %v978 = vrot.slane %v977, 4
    %v979 = vadd.f32 %v977, %v978
    %v980 = vrot.slane %v979, 2
    %v981 = vadd.f32 %v979, %v980
    %v982 = vrot.slane %v981, 1
    %v983 = vadd.f32 %v981, %v982
    %v984 = vadd.f32 %v868, %v870
    %v985 = vadd.f32 %v984, %v872
    %v986 = vadd.f32 %v985, %v874
    %v987 = vrot.slane %v986, 4
    %v988 = vadd.f32 %v986, %v987
    %v989 = vrot.slane %v988, 2
    %v990 = vadd.f32 %v988, %v989
    %v991 = vrot.slane %v990, 1
    %v992 = vadd.f32 %v990, %v991
    %v993 = vadd.f32 %v869, %v871
    %v994 = vadd.f32 %v993, %v873
    %v995 = vadd.f32 %v994, %v875
    %v996 = vrot.slane %v995, 4
    %v997 = vadd.f32 %v995, %v996
    %v998 = vrot.slane %v997, 2
    %v999 = vadd.f32 %v997, %v998
    %v1000 = vrot.slane %v999, 1
    %v1001 = vadd.f32 %v999, %v1000
    %v1002 = vadd.f32 %v876, %v878
    %v1003 = vadd.f32 %v1002, %v880
    %v1004 = vadd.f32 %v1003, %v882
    %v1005 = vrot.slane %v1004, 4
    %v1006 = vadd.f32 %v1004, %v1005
    %v1007 = vrot.slane %v1006, 2
    %v1008 = vadd.f32 %v1006, %v1007
    %v1009 = vrot.slane %v1008, 1
    %v1010 = vadd.f32 %v1008, %v1009
    %v1011 = vadd.f32 %v877, %v879
    %v1012 = vadd.f32 %v1011, %v881
    %v1013 = vadd.f32 %v1012, %v883
    %v1014 = vrot.slane %v1013, 4
    %v1015 = vadd.f32 %v1013, %v1014
    %v1016 = vrot.slane %v1015, 2
    %v1017 = vadd.f32 %v1015, %v1016
    %v1018 = vrot.slane %v1017, 1
    %v1019 = vadd.f32 %v1017, %v1018
    %v1020 = vadd.f32 %v884, %v886
    %v1021 = vadd.f32 %v1020, %v888
    %v1022 = vadd.f32 %v1021, %v890
    %v1023 = vrot.slane %v1022, 4
    %v1024 = vadd.f32 %v1022, %v1023
    %v1025 = vrot.slane %v1024, 2
    %v1026 = vadd.f32 %v1024, %v1025
    %v1027 = vrot.slane %v1026, 1
    %v1028 = vadd.f32 %v1026, %v1027
    %v1029 = vadd.f32 %v885, %v887
    %v1030 = vadd.f32 %v1029, %v889
    %v1031 = vadd.f32 %v1030, %v891
    %v1032 = vrot.slane %v1031, 4
    %v1033 = vadd.f32 %v1031, %v1032
    %v1034 = vrot.slane %v1033, 2
    %v1035 = vadd.f32 %v1033, %v1034
    %v1036 = vrot.slane %v1035, 1
    %v1037 = vadd.f32 %v1035, %v1036
    %vm1054 = vcmask 1041409
    %v1055 = vsel %vm1054, %v920, %v902
    %vm1056 = vcmask 1042434
    %v1057 = vsel %vm1056, %v938, %v1055
    %vm1058 = vcmask 1043459
    %v1059 = vsel %vm1058, %v956, %v1057
    %vm1060 = vcmask 1044484
    %v1061 = vsel %vm1060, %v974, %v1059
    %vm1062 = vcmask 1045509
    %v1063 = vsel %vm1062, %v992, %v1061
    %vm1064 = vcmask 1046534
    %v1065 = vsel %vm1064, %v1010, %v1063
    %vm1066 = vcmask 1047559
    %v1067 = vsel %vm1066, %v1028, %v1065
    %v1068 = vsel %vm1054, %v929, %v911
    %v1069 = vsel %vm1056, %v947, %v1068
    %v1070 = vsel %vm1058, %v965, %v1069
    %v1071 = vsel %vm1060, %v983, %v1070
    %v1072 = vsel %vm1062, %v1001, %v1071
    %v1073 = vsel %vm1064, %v1019, %v1072
    %v1074 = vsel %vm1066, %v1037, %v1073
    %v1077 = vadd.f32 %v892, %v1067
    %v1078 = vadd.f32 %v893, %v1074
    %1079 = vst [vmem:[#allocation2] sm:$0xff] %v1077
    %1080 = vst [vmem:[#allocation2 + $0x8] sm:$0xff] %v1078
    // Predicated region
    $region46: #{tpu_custom_call.1} parent=1 // pred_check
      %p1081 = pneg %p85
    $region47: #{tpu_custom_call.1} parent=1 // pred_check_branch
      %1083 = sbr.rel (%p1081) target = $region49
    $region48: #{tpu_custom_call.1} parent=1 // pred_region
      %v1084 = vld [vmem:[#allocation2] sm:$0xff]
      %v1085 = vld [vmem:[#allocation2 + $0x8] sm:$0xff]
      %v1086 = vrot.slane %v1084, 4
      %v1087 = vadd.f32 %v1084, %v1086
      %v1088 = vrot.slane %v1087, 2
      %v1089 = vadd.f32 %v1087, %v1088
      %v1090 = vrot.slane %v1089, 1
      %v1091 = vadd.f32 %v1089, %v1090
      %v1092 = vrot.slane %v1085, 4
      %v1093 = vadd.f32 %v1085, %v1092
      %v1094 = vrot.slane %v1093, 2
      %v1095 = vadd.f32 %v1093, %v1094
      %v1096 = vrot.slane %v1095, 1
      %v1097 = vadd.f32 %v1095, %v1096
      %v1098 = vrcp.pop 8.0
      %v1099 = vmul.f32 8.0, %v1098
      %v1100 = vsub.f32 1.0, %v1099
      %v1101 = vmul.f32 %v1098, %v1100
      %v1102 = vadd.f32 %v1098, %v1101
      %vm1103 = vweird.f32 %v1098
      %v1104 = vsel %vm1103, %v1098, %v1102
      %v1105 = vmul.f32 %v1091, %v1104
      %v1106 = vmul.f32 %v1097, %v1104
      %v1107 = vsub.f32 %v1084, %v1105
      %v1108 = vsub.f32 %v1085, %v1106
      %v1109 = vmul.f32 %v1107, %v1107
      %v1110 = vmul.f32 %v1108, %v1108
      %v1111 = vrot.slane %v1109, 4
      %v1112 = vadd.f32 %v1109, %v1111
      %v1113 = vrot.slane %v1112, 2
      %v1114 = vadd.f32 %v1112, %v1113
      %v1115 = vrot.slane %v1114, 1
      %v1116 = vadd.f32 %v1114, %v1115
      %v1117 = vrot.slane %v1110, 4
      %v1118 = vadd.f32 %v1110, %v1117
      %v1119 = vrot.slane %v1118, 2
      %v1120 = vadd.f32 %v1118, %v1119
      %v1121 = vrot.slane %v1120, 1
      %v1122 = vadd.f32 %v1120, %v1121
      %v1123 = vmul.f32 %v1116, %v1104
      %v1124 = vmul.f32 %v1122, %v1104
      %v1125 = vadd.f32 %v1123, 1e-05
      %v1126 = vadd.f32 %v1124, 1e-05
      %v1127 = vrsqrt.pop %v1125
      %v1128 = vmul.f32 %v1127, %v1125
      %v1129 = vmul.f32 %v1128, %v1127
      %v1130 = vmul.f32 0.5, %v1129
      %v1131 = vsub.f32 1.5, %v1130
      %v1132 = vmul.f32 %v1127, %v1131
      %vm1133 = vweird.f32 %v1125
      %vm1134 = vweird.f32 %v1127
      %vm1135 = vmor %vm1133, %vm1134
      %v1136 = vsel %vm1135, %v1127, %v1132
      %v1137 = vrsqrt.pop %v1126
      %v1138 = vmul.f32 %v1137, %v1126
      %v1139 = vmul.f32 %v1138, %v1137
      %v1140 = vmul.f32 0.5, %v1139
      %v1141 = vsub.f32 1.5, %v1140
      %v1142 = vmul.f32 %v1137, %v1141
      %vm1143 = vweird.f32 %v1126
      %vm1144 = vweird.f32 %v1137
      %vm1145 = vmor %vm1143, %vm1144
      %v1146 = vsel %vm1145, %v1137, %v1142
      %v1147 = vmul.f32 %v1107, %v1136
      %v1148 = vmul.f32 %v1108, %v1146
      %v1149 = vld [vmem:[%s4] sm:$0x3]
      %v1151 = vperm.slane %v1149, 0
      %v1152 = vperm.slane %v1149, 1
      %v1155 = vmul.f32 %v1147, %v1151
      %v1156 = vmul.f32 %v1148, %v1152
      %v1157 = vld [vmem:[%s5] sm:$0x3]
      %v1159 = vperm.slane %v1157, 0
      %v1160 = vperm.slane %v1157, 1
      %v1163 = vadd.f32 %v1155, %v1159
      %v1164 = vadd.f32 %v1156, %v1160
      %1165 = vst [vmem:[#allocation11] sm:$0xff] %v1163
      %1166 = vst [vmem:[#allocation11 + $0x8] sm:$0xff] %v1164
    $region49: #{tpu_custom_call.1} parent=1 // pred_fallthru
      _
    // Predicated region
    $region50: #{tpu_custom_call.1} parent=1 // pred_check
      _
    $region51: #{tpu_custom_call.1} parent=1 // pred_check_branch
      %1168 = sbr.rel (0) target = $region53
    $region52: #{tpu_custom_call.1} parent=1 // pred_region
      %1170 = vsyncadd [#allocation5], 0
      %s1172 = sshll.u32 [#allocation11], 4
      %s1173 = int_to_ptr.vmem [resolvable:$true] %s1172
      %s1174 = sshll.u32 %s6, 4
      %s1175 = int_to_ptr.hbm [resolvable:$true] %s1174
      %1177 = dma.vmem_to_hbm [thread:$0]  %s1173, 256, %s1175, [#allocation5]
    $region53: #{tpu_custom_call.1} parent=1 // pred_fallthru
      _
    // Predicated region
    $region54: #{tpu_custom_call.1} parent=1 // pred_check
      _
    $region55: #{tpu_custom_call.1} parent=1 // pred_check_branch
      %1179 = sbr.rel (0) target = $region57
    $region56: #{tpu_custom_call.1} parent=1 // pred_region
      %1181 = dma.done [#allocation5], 256
    $region57: #{tpu_custom_call.1} parent=1 // pred_fallthru
      _
    %1182 = vsyncpa [#allocation4], 1
    %1183 = vsyncpa [#allocation7], 1
    %1184 = vsyncpa [#allocation10], 1
    %1185 = vsyncpa [#allocation5], 1

</llo_original>
